<compile_context>
chip_gen: v5e
topology: v5e:2x2
jax: 0.10.0
libtpu: 0.0.40
codegen_flags: <defaults>
</compile_context>

<pallas_src>
import jax
import jax.numpy as jnp
from jax.experimental import pallas as pl
from jax.experimental.pallas import tpu as pltpu

NAM_LABELS = 5
HID_PAD = 128                 # hidden dim padded to one full lane group
IN_ROWS = 3 + NAM_LABELS      # x0, x1, t, onehot(c) -> 8 = one sublane group
OUT_ROWS = 8                  # 2 outputs padded to one sublane group
LANE = 128


def _round_up(a, m):
    return -(-a // m) * m


def _mlp_kernel(h8_ref, w1cb_ref, w2_ref, b2_ref, w3_ref, b3_ref, o_ref):
    """Column-major (features-on-sublanes, batch-on-lanes) 3-layer MLP.

    h8_ref  : (IN_ROWS, TM) f32   -- [x0, x1, t, onehot(c)] columns
    w1cb_ref: (HID_PAD, IN_ROWS)  f32  fused fc1 table (b1 folded into label rows)
    w2_ref  : (HID_PAD, HID_PAD)  bf16 (= W2^T, zero-padded)
    b2_ref  : (HID_PAD, 1)        f32
    w3_ref  : (OUT_ROWS, HID_PAD) bf16 (= W3^T, zero-padded)
    b3_ref  : (OUT_ROWS, 1)       f32
    o_ref   : (OUT_ROWS, TM)      f32
    """
    h8 = h8_ref[...]

    # fc1 (+ embedding lookup + b1) as a single K=8 MXU matmul.
    z1 = jnp.dot(w1cb_ref[...], h8, preferred_element_type=jnp.float32)
    a1 = jnp.where(z1 > 0, z1, 0.1 * z1)

    # fc2: bf16 MXU, f32 accumulation, lane-broadcast bias column.
    z2 = jnp.dot(w2_ref[...], a1.astype(jnp.bfloat16),
                 preferred_element_type=jnp.float32) + b2_ref[...]
    a2 = jnp.where(z2 > 0, z2, 0.1 * z2)

    # fc3: bf16 MXU, f32 accumulation.
    z3 = jnp.dot(w3_ref[...], a2.astype(jnp.bfloat16),
                 preferred_element_type=jnp.float32) + b3_ref[...]
    o_ref[...] = z3.astype(o_ref.dtype)


def con_denoiser_forward(x, t, c, params, *, tm_max=2048,
                         batch_dim_semantics=pltpu.PARALLEL):
    """x: (B, 2) float, t: (B,) or (B, 1) float, c: (B,) int32 in [0, NAM_LABELS)."""
    B = x.shape[0]
    dim = params["w1"].shape[1]
    n_out = params["w3"].shape[1]

    # --- one-time weight-space prep (tiny, done by XLA outside the kernel) ---
    w1 = jnp.asarray(params["w1"], jnp.float32)                 # (3 + E, dim)
    b1 = jnp.asarray(params["b1"], jnp.float32).reshape(1, -1)  # (1, dim)
    embed = jnp.asarray(params["embed"], jnp.float32)           # (5, E)

    # Fused fc1 table: rows [x0, x1, t, label_0..label_4]; b1 folded into the
    # label rows (exactly one onehot entry is 1 per valid row, so b1 is added once).
    w1cb = jnp.concatenate([w1[:3, :], embed @ w1[3:, :] + b1], axis=0)  # (8, dim)
    w1cbT = jnp.pad(w1cb.T, ((0, HID_PAD - dim), (0, IN_ROWS - w1cb.shape[0])))

    w2T = jnp.pad(jnp.asarray(params["w2"], jnp.float32).T,
                  ((0, HID_PAD - dim), (0, HID_PAD - dim))).astype(jnp.bfloat16)
    b2c = jnp.pad(jnp.asarray(params["b2"], jnp.float32).reshape(-1, 1),
                  ((0, HID_PAD - dim), (0, 0)))                         # (HID_PAD, 1)
    w3T = jnp.pad(jnp.asarray(params["w3"], jnp.float32).T,
                  ((0, OUT_ROWS - n_out), (0, HID_PAD - dim))).astype(jnp.bfloat16)
    b3c = jnp.pad(jnp.asarray(params["b3"], jnp.float32).reshape(-1, 1),
                  ((0, OUT_ROWS - n_out), (0, 0)))                      # (OUT_ROWS, 1)

    # --- balanced batch tiling, lane-aligned (last dim of blocks = batch) ---
    Bp0 = _round_up(max(B, LANE), LANE)
    n_tiles = pl.cdiv(Bp0, tm_max)
    TM = _round_up(pl.cdiv(Bp0, n_tiles), LANE)
    Bp = n_tiles * TM

    # h8 = [x, t, onehot(c)] laid out batch-on-lanes: (IN_ROWS, Bp).
    # Out-of-range labels produce an all-zero onehot row (drops embed + b1)
    # instead of erroring like the reference gather; valid inputs are exact.
    xt = jnp.concatenate([jnp.asarray(x, jnp.float32),
                          jnp.asarray(t, jnp.float32).reshape(B, 1)], axis=-1)
    onehot = jax.nn.one_hot(jnp.asarray(c, jnp.int32), NAM_LABELS,
                            dtype=jnp.float32)
    h8 = jnp.concatenate([xt, onehot], axis=-1)                         # (B, 8)
    h8 = jnp.pad(h8, ((0, Bp - B), (0, IN_ROWS - h8.shape[1]))).T       # (8, Bp)

    col = lambda shape: pl.BlockSpec(shape, lambda i: (0, i))    # batch-tiled
    const = lambda shape: pl.BlockSpec(shape, lambda i: (0, 0))  # VMEM-resident

    weight_bytes = (HID_PAD * IN_ROWS * 4 + HID_PAD * HID_PAD * 2 + HID_PAD * 4
                    + OUT_ROWS * HID_PAD * 2 + OUT_ROWS * 4)
    cost = pl.CostEstimate(
        flops=2 * Bp * (IN_ROWS * HID_PAD + HID_PAD * HID_PAD
                        + HID_PAD * OUT_ROWS),
        transcendentals=0,
        bytes_accessed=IN_ROWS * Bp * 4 + OUT_ROWS * Bp * 4 + weight_bytes,
    )

    out = pl.pallas_call(
        _mlp_kernel,
        out_shape=jax.ShapeDtypeStruct((OUT_ROWS, Bp), jnp.float32),
        grid=(n_tiles,),
        in_specs=[
            col((IN_ROWS, TM)),            # h8 columns for this batch tile
            const((HID_PAD, IN_ROWS)),     # fused fc1 table (f32, K=8)
            const((HID_PAD, HID_PAD)),     # W2^T (bf16)
            const((HID_PAD, 1)),           # b2 column
            const((OUT_ROWS, HID_PAD)),    # W3^T (bf16, rows padded 2 -> 8)
            const((OUT_ROWS, 1)),          # b3 column
        ],
        out_specs=col((OUT_ROWS, TM)),     # lane-dense output, unmasked vst
        compiler_params=pltpu.CompilerParams(
            dimension_semantics=(batch_dim_semantics,),
            vmem_limit_bytes=32 * 1024 * 1024),
        cost_estimate=cost,
    )(h8, w1cbT, w2T, b2c, w3T, b3c)

    return out[:n_out, :B].T


def init_params(key, dim=64, embed_dim=5):
    """Deterministic synthetic parameters matching the module's shapes.

    Weights stored as (in_features, out_features); biases as (1, out)."""
    ks = jax.random.split(key, 7)
    in1 = 3 + embed_dim

    def lin_init(kw, kb, fan_in, fan_out):
        bound = 1.0 / jnp.sqrt(fan_in)
        w = jax.random.uniform(kw, (fan_in, fan_out), jnp.float32, -bound, bound)
        b = jax.random.uniform(kb, (1, fan_out), jnp.float32, -bound, bound)
        return w, b

    embed = jax.random.normal(ks[0], (NAM_LABELS, embed_dim), jnp.float32)
    w1, b1 = lin_init(ks[1], ks[2], in1, dim)
    w2, b2 = lin_init(ks[3], ks[4], dim, dim)
    w3, b3 = lin_init(ks[5], ks[6], dim, 2)
    return dict(embed=embed, w1=w1, b1=b1, w2=w2, b2=b2, w3=w3, b3=b3)


def _reference_forward(x, t, c, params):
    """Pure-JAX f32 reference (matches the PyTorch module)."""
    c_embed = jnp.take(params["embed"], c, axis=0)
    h = jnp.concatenate([x, t, c_embed], axis=-1).astype(jnp.float32)
    lrelu = lambda z: jnp.where(z > 0, z, 0.1 * z)
    h = lrelu(h @ params["w1"] + params["b1"])
    h = lrelu(h @ params["w2"] + params["b2"])
    return h @ params["w3"] + params["b3"]


if __name__ == "__main__":
    key = jax.random.PRNGKey(0)
    k_params, k_x, k_t, k_c = jax.random.split(key, 4)

    dim, embed_dim = 64, 5
    B = 8

    params = init_params(k_params, dim=dim, embed_dim=embed_dim)

    x = jax.random.normal(k_x, (B, 2), jnp.float32)              # 2-D points
    t = jax.random.uniform(k_t, (B, 1), jnp.float32)             # diffusion time
    c = jax.random.randint(k_c, (B,), 0, NAM_LABELS, jnp.int32)  # class labels

    out = jax.block_until_ready(con_denoiser_forward(x, t, c, params))

    ref = _reference_forward(x, t, c, params)
    assert out.shape == (B, 2)
    # fc2/fc3 run through the MXU in bf16 (f32 accumulation) -> relaxed tolerance.
    assert jnp.allclose(out, ref, atol=2e-2, rtol=2e-2), "mismatch vs JAX reference"

    print("KERNEL_OK")
</pallas_src>

<mosaic_0001>
module attributes {stable_mosaic.version = 11 : i64} {
  func.func @_mlp_kernel(%arg0: i32, %arg1: memref<8x128xf32, #tpu.memory_space<vmem>>, %arg2: memref<128x8xf32, #tpu.memory_space<vmem>>, %arg3: memref<128x128xbf16, #tpu.memory_space<vmem>>, %arg4: memref<128x1xf32, #tpu.memory_space<vmem>>, %arg5: memref<8x128xbf16, #tpu.memory_space<vmem>>, %arg6: memref<8x1xf32, #tpu.memory_space<vmem>>, %arg7: memref<8x128xf32, #tpu.memory_space<vmem>>) attributes {dimension_semantics = [#tpu.dimension_semantics<parallel>], iteration_bounds = array<i64: 1>, scalar_prefetch = 0 : i64, scratch_operands = 0 : i64, tpu.core_type = #tpu.core_type<tc>, window_params = [{transform_indices = @transform_0, window_bounds = array<i64: 8, 128>}, {pipeline_mode = #tpu.pipeline_mode<synchronous>, transform_indices = @transform_1, window_bounds = array<i64: 128, 8>}, {pipeline_mode = #tpu.pipeline_mode<synchronous>, transform_indices = @transform_2, window_bounds = array<i64: 128, 128>}, {pipeline_mode = #tpu.pipeline_mode<synchronous>, transform_indices = @transform_3, window_bounds = array<i64: 128, 1>}, {pipeline_mode = #tpu.pipeline_mode<synchronous>, transform_indices = @transform_4, window_bounds = array<i64: 8, 128>}, {pipeline_mode = #tpu.pipeline_mode<synchronous>, transform_indices = @transform_5, window_bounds = array<i64: 8, 1>}, {transform_indices = @transform_6, window_bounds = array<i64: 8, 128>}]} {
    %c0 = arith.constant 0 : index
    %c0_0 = arith.constant 0 : index
    %0 = vector.load %arg1[%c0, %c0_0] : memref<8x128xf32, #tpu.memory_space<vmem>>, vector<8x128xf32>
    %c0_1 = arith.constant 0 : index
    %c0_2 = arith.constant 0 : index
    %1 = vector.load %arg2[%c0_1, %c0_2] : memref<128x8xf32, #tpu.memory_space<vmem>>, vector<128x8xf32>
    %cst = arith.constant dense<0.000000e+00> : vector<128x128xf32>
    %2 = tpu.matmul %1, %0, %cst {dimension_numbers = #tpu.dot_dimension_numbers<[1], [0], [0], [1], [0, 0, 1, 1], [], []>} : vector<128x8xf32>, vector<8x128xf32>, vector<128x128xf32> -> vector<128x128xf32>
    %cst_3 = arith.constant 0.000000e+00 : f32
    %3 = vector.broadcast %cst_3 : f32 to vector<128x128xf32>
    %4 = arith.cmpf ogt, %2, %3 : vector<128x128xf32>
    %cst_4 = arith.constant 1.000000e-01 : f32
    %5 = vector.broadcast %cst_4 : f32 to vector<128x128xf32>
    %6 = arith.mulf %5, %2 : vector<128x128xf32>
    %7 = arith.select %4, %2, %6 : vector<128x128xi1>, vector<128x128xf32>
    %c0_5 = arith.constant 0 : index
    %c0_6 = arith.constant 0 : index
    %8 = vector.load %arg3[%c0_5, %c0_6] : memref<128x128xbf16, #tpu.memory_space<vmem>>, vector<128x128xbf16>
    %9 = arith.truncf %7 : vector<128x128xf32> to vector<128x128xbf16>
    %cst_7 = arith.constant dense<0.000000e+00> : vector<128x128xf32>
    %10 = tpu.matmul %8, %9, %cst_7 {dimension_numbers = #tpu.dot_dimension_numbers<[1], [0], [0], [1], [0, 0, 1, 1], [], []>} : vector<128x128xbf16>, vector<128x128xbf16>, vector<128x128xf32> -> vector<128x128xf32>
    %c0_8 = arith.constant 0 : index
    %c0_9 = arith.constant 0 : index
    %11 = vector.load %arg4[%c0_8, %c0_9] : memref<128x1xf32, #tpu.memory_space<vmem>>, vector<128x1xf32>
    %12 = vector.broadcast %11 : vector<128x1xf32> to vector<128x128xf32>
    %13 = arith.addf %10, %12 : vector<128x128xf32>
    %cst_10 = arith.constant 0.000000e+00 : f32
    %14 = vector.broadcast %cst_10 : f32 to vector<128x128xf32>
    %15 = arith.cmpf ogt, %13, %14 : vector<128x128xf32>
    %cst_11 = arith.constant 1.000000e-01 : f32
    %16 = vector.broadcast %cst_11 : f32 to vector<128x128xf32>
    %17 = arith.mulf %16, %13 : vector<128x128xf32>
    %18 = arith.select %15, %13, %17 : vector<128x128xi1>, vector<128x128xf32>
    %c0_12 = arith.constant 0 : index
    %c0_13 = arith.constant 0 : index
    %19 = vector.load %arg5[%c0_12, %c0_13] : memref<8x128xbf16, #tpu.memory_space<vmem>>, vector<8x128xbf16>
    %20 = arith.truncf %18 : vector<128x128xf32> to vector<128x128xbf16>
    %cst_14 = arith.constant dense<0.000000e+00> : vector<8x128xf32>
    %21 = tpu.matmul %19, %20, %cst_14 {dimension_numbers = #tpu.dot_dimension_numbers<[1], [0], [0], [1], [0, 0, 1, 1], [], []>} : vector<8x128xbf16>, vector<128x128xbf16>, vector<8x128xf32> -> vector<8x128xf32>
    %c0_15 = arith.constant 0 : index
    %c0_16 = arith.constant 0 : index
    %22 = vector.load %arg6[%c0_15, %c0_16] : memref<8x1xf32, #tpu.memory_space<vmem>>, vector<8x1xf32>
    %23 = vector.broadcast %22 : vector<8x1xf32> to vector<8x128xf32>
    %24 = arith.addf %21, %23 : vector<8x128xf32>
    %c0_17 = arith.constant 0 : index
    %c0_18 = arith.constant 0 : index
    %25 = vector.load %arg7[%c0_17, %c0_18] : memref<8x128xf32, #tpu.memory_space<vmem>>, vector<8x128xf32>
    tpu.vector_store %arg7[%c0_17, %c0_18], %24 {strides = array<i32>} : memref<8x128xf32, #tpu.memory_space<vmem>>, vector<8x128xf32>,
    return
  }
  func.func @transform_0(%arg0: i32) -> (i32, i32) {
    %c0_i32 = arith.constant 0 : i32
    %c0_i32_0 = arith.constant 0 : i32
    return %c0_i32, %arg0 : i32, i32
  }
  func.func @transform_1(%arg0: i32) -> (i32, i32) {
    %c0_i32 = arith.constant 0 : i32
    %c0_i32_0 = arith.constant 0 : i32
    %c0_i32_1 = arith.constant 0 : i32
    return %c0_i32, %c0_i32_0 : i32, i32
  }
  func.func @transform_2(%arg0: i32) -> (i32, i32) {
    %c0_i32 = arith.constant 0 : i32
    %c0_i32_0 = arith.constant 0 : i32
    %c0_i32_1 = arith.constant 0 : i32
    return %c0_i32, %c0_i32_0 : i32, i32
  }
  func.func @transform_3(%arg0: i32) -> (i32, i32) {
    %c0_i32 = arith.constant 0 : i32
    %c0_i32_0 = arith.constant 0 : i32
    %c0_i32_1 = arith.constant 0 : i32
    return %c0_i32, %c0_i32_0 : i32, i32
  }
  func.func @transform_4(%arg0: i32) -> (i32, i32) {
    %c0_i32 = arith.constant 0 : i32
    %c0_i32_0 = arith.constant 0 : i32
    %c0_i32_1 = arith.constant 0 : i32
    return %c0_i32, %c0_i32_0 : i32, i32
  }
  func.func @transform_5(%arg0: i32) -> (i32, i32) {
    %c0_i32 = arith.constant 0 : i32
    %c0_i32_0 = arith.constant 0 : i32
    %c0_i32_1 = arith.constant 0 : i32
    return %c0_i32, %c0_i32_0 : i32, i32
  }
  func.func @transform_6(%arg0: i32) -> (i32, i32) {
    %c0_i32 = arith.constant 0 : i32
    %c0_i32_0 = arith.constant 0 : i32
    return %c0_i32, %arg0 : i32, i32
  }
}

</mosaic_0001>

<llo_original>
// kernel: tpu_custom_call.1
$region0: #{tpu_custom_call.1}
  #allocation0 [shape = 'u32[]', space=smem, size = 0x4, offset = 0x4, fixed_abs, tag = 'smem constant byte address 0x4 - core index']
  #allocation1 [shape = 'u32[72,128]{1,0:T(1,128)}', space=vmem, size = 0x9000, scoped, tag = 'internal scratch']
  %s0 = inlined_call_operand.vmem [shape: f32[8,128], index: 0, kind: input, shape index: {}]
  %s1 = inlined_call_operand.vmem [shape: f32[128,8], index: 1, kind: input, shape index: {}]
  %s2 = inlined_call_operand.vmem [shape: bf16[128,128], index: 2, kind: input, shape index: {}]
  %s3 = inlined_call_operand.vmem [shape: f32[128,1], index: 3, kind: input, shape index: {}]
  %s4 = inlined_call_operand.vmem [shape: bf16[8,128], index: 4, kind: input, shape index: {}]
  %s5 = inlined_call_operand.vmem [shape: f32[8,1], index: 5, kind: input, shape index: {}]
  %s6 = inlined_call_operand.hbm [shape: f32[8,128], index: 6, kind: output, shape index: {}]
  %s7 = sld [smem:[#allocation0]]
  $region34: #{tpu_custom_call.1} parent=0
    _
  %s9 = ssub.s32 1, %s7
  %s10 = scalar_select 0, %s9, %s7
  $region1: #{tpu_custom_call.1} parent=0
    #allocation2 [shape = 'u8[4096]{0}', space=vmem, size = 0x1000, scoped, tag = 'output window, operand 0, single buffered']
    #allocation3 [shape = 's32[1]{0}', space=sflag, size = 0x4, scoped, tag = 'scoped memory for tpu_custom_call.1']
    %11 = vsyncpa [#allocation3], 0
    // Predicated region
    $region2: #{tpu_custom_call.1} parent=1 // pred_check
      _
    $region3: #{tpu_custom_call.1} parent=1 // pred_check_branch
      %13 = sbr.rel (0) target = $region5
    $region4: #{tpu_custom_call.1} parent=1 // pred_region
      _
    $region5: #{tpu_custom_call.1} parent=1 // pred_fallthru
      _
    // Predicated region
    $region6: #{tpu_custom_call.1} parent=1 // pred_check
      _
    $region7: #{tpu_custom_call.1} parent=1 // pred_check_branch
      %15 = sbr.rel (0) target = $region9
    $region8: #{tpu_custom_call.1} parent=1 // pred_region
      _
    $region9: #{tpu_custom_call.1} parent=1 // pred_fallthru
      _
    // Predicated region
    $region10: #{tpu_custom_call.1} parent=1 // pred_check
      _
    $region11: #{tpu_custom_call.1} parent=1 // pred_check_branch
      %17 = sbr.rel (0) target = $region13
    $region12: #{tpu_custom_call.1} parent=1 // pred_region
      _
    $region13: #{tpu_custom_call.1} parent=1 // pred_fallthru
      _
    // Predicated region
    $region14: #{tpu_custom_call.1} parent=1 // pred_check
      _
    $region15: #{tpu_custom_call.1} parent=1 // pred_check_branch
      %19 = sbr.rel (0) target = $region17
    $region16: #{tpu_custom_call.1} parent=1 // pred_region
      _
    $region17: #{tpu_custom_call.1} parent=1 // pred_fallthru
      _
    // Predicated region
    $region18: #{tpu_custom_call.1} parent=1 // pred_check
      _
    $region19: #{tpu_custom_call.1} parent=1 // pred_check_branch
      %21 = sbr.rel (0) target = $region21
    $region20: #{tpu_custom_call.1} parent=1 // pred_region
      _
    $region21: #{tpu_custom_call.1} parent=1 // pred_fallthru
      _
    // Predicated region
    $region22: #{tpu_custom_call.1} parent=1 // pred_check
      _
    $region23: #{tpu_custom_call.1} parent=1 // pred_check_branch
      %23 = sbr.rel (0) target = $region25
    $region24: #{tpu_custom_call.1} parent=1 // pred_region
      _
    $region25: #{tpu_custom_call.1} parent=1 // pred_fallthru
      _
    %v24 = vld [vmem:[%s0] sm:$0xff]
    %v25 = vld [vmem:[%s1] sm:$0xff]
    %v26 = vld [vmem:[%s1 + $0x8] sm:$0xff]
    %v27 = vld [vmem:[%s1 + $0x10] sm:$0xff]
    %v28 = vld [vmem:[%s1 + $0x18] sm:$0xff]
    %v29 = vld [vmem:[%s1 + $0x20] sm:$0xff]
    %v30 = vld [vmem:[%s1 + $0x28] sm:$0xff]
    %v31 = vld [vmem:[%s1 + $0x30] sm:$0xff]
    %v32 = vld [vmem:[%s1 + $0x38] sm:$0xff]
    %v33 = vld [vmem:[%s1 + $0x40] sm:$0xff]
    %v34 = vld [vmem:[%s1 + $0x48] sm:$0xff]
    %v35 = vld [vmem:[%s1 + $0x50] sm:$0xff]
    %v36 = vld [vmem:[%s1 + $0x58] sm:$0xff]
    %v37 = vld [vmem:[%s1 + $0x60] sm:$0xff]
    %v38 = vld [vmem:[%s1 + $0x68] sm:$0xff]
    %v39 = vld [vmem:[%s1 + $0x70] sm:$0xff]
    %v40 = vld [vmem:[%s1 + $0x78] sm:$0xff]
    %vm41 = vcmask 64512
    %v43 = vsel %vm41, %v25, 0
    %v46 = vsel %vm41, %v26, 0
    %v49 = vsel %vm41, %v27, 0
    %v52 = vsel %vm41, %v28, 0
    %v55 = vsel %vm41, %v29, 0
    %v58 = vsel %vm41, %v30, 0
    %v61 = vsel %vm41, %v31, 0
    %v64 = vsel %vm41, %v32, 0
    %v67 = vsel %vm41, %v33, 0
    %v70 = vsel %vm41, %v34, 0
    %v73 = vsel %vm41, %v35, 0
    %v76 = vsel %vm41, %v36, 0
    %v79 = vsel %vm41, %v37, 0
    %v82 = vsel %vm41, %v38, 0
    %v85 = vsel %vm41, %v39, 0
    %v88 = vsel %vm41, %v40, 0
    %90 = vmatpush.msra.mxu0 0.0
    %91 = vmatpush.msra.mxu0 0.0
    %92 = vmatpush.msra.mxu0 0.0
    %93 = vmatpush.msra.mxu0 0.0
    %94 = vmatpush.msra.mxu0 0.0
    %95 = vmatpush.msra.mxu0 0.0
    %96 = vmatpush.msra.mxu0 0.0
    %97 = vmatpush.msra.mxu0 0.0
    %98 = vmatpush.msra.mxu0 0.0
    %99 = vmatpush.msra.mxu0 0.0
    %100 = vmatpush.msra.mxu0 0.0
    %101 = vmatpush.msra.mxu0 0.0
    %102 = vmatpush.msra.mxu0 0.0
    %103 = vmatpush.msra.mxu0 0.0
    %104 = vmatpush.msra.mxu0 0.0
    %105 = vmatpush.msra.mxu0 %v24
    %106 = vmatmul.f32.gmra.mxu0 %v43
    %v107 = vpop.f32.mrf.mxu0
    %v108 = vadd.f32 0.0, %v107
    %109 = vmatmul.f32.gmra.mxu0 %v46
    %v110 = vpop.f32.mrf.mxu0
    %v111 = vadd.f32 0.0, %v110
    %112 = vmatmul.f32.gmra.mxu0 %v49
    %v113 = vpop.f32.mrf.mxu0
    %v114 = vadd.f32 0.0, %v113
    %115 = vmatmul.f32.gmra.mxu0 %v52
    %v116 = vpop.f32.mrf.mxu0
    %v117 = vadd.f32 0.0, %v116
    %118 = vmatmul.f32.gmra.mxu0 %v55
    %v119 = vpop.f32.mrf.mxu0
    %v120 = vadd.f32 0.0, %v119
    %121 = vmatmul.f32.gmra.mxu0 %v58
    %v122 = vpop.f32.mrf.mxu0
    %v123 = vadd.f32 0.0, %v122
    %124 = vmatmul.f32.gmra.mxu0 %v61
    %v125 = vpop.f32.mrf.mxu0
    %v126 = vadd.f32 0.0, %v125
    %127 = vmatmul.f32.gmra.mxu0 %v64
    %v128 = vpop.f32.mrf.mxu0
    %v129 = vadd.f32 0.0, %v128
    %130 = vmatmul.f32.gmra.mxu0 %v67
    %v131 = vpop.f32.mrf.mxu0
    %v132 = vadd.f32 0.0, %v131
    %133 = vmatmul.f32.gmra.mxu0 %v70
    %v134 = vpop.f32.mrf.mxu0
    %v135 = vadd.f32 0.0, %v134
    %136 = vmatmul.f32.gmra.mxu0 %v73
    %v137 = vpop.f32.mrf.mxu0
    %v138 = vadd.f32 0.0, %v137
    %139 = vmatmul.f32.gmra.mxu0 %v76
    %v140 = vpop.f32.mrf.mxu0
    %v141 = vadd.f32 0.0, %v140
    %142 = vmatmul.f32.gmra.mxu0 %v79
    %v143 = vpop.f32.mrf.mxu0
    %v144 = vadd.f32 0.0, %v143
    %145 = vmatmul.f32.gmra.mxu0 %v82
    %v146 = vpop.f32.mrf.mxu0
    %v147 = vadd.f32 0.0, %v146
    %148 = vmatmul.f32.gmra.mxu0 %v85
    %v149 = vpop.f32.mrf.mxu0
    %v150 = vadd.f32 0.0, %v149
    %151 = vmatmul.f32.gmra.mxu0 %v88
    %v152 = vpop.f32.mrf.mxu0
    %v153 = vadd.f32 0.0, %v152
    %154 = vdwg.mxu0
    %vm155 = vcmp.gt.f32.partialorder %v108, 0.0
    %vm156 = vcmp.gt.f32.partialorder %v111, 0.0
    %vm157 = vcmp.gt.f32.partialorder %v114, 0.0
    %vm158 = vcmp.gt.f32.partialorder %v117, 0.0
    %vm159 = vcmp.gt.f32.partialorder %v120, 0.0
    %vm160 = vcmp.gt.f32.partialorder %v123, 0.0
    %vm161 = vcmp.gt.f32.partialorder %v126, 0.0
    %vm162 = vcmp.gt.f32.partialorder %v129, 0.0
    %vm163 = vcmp.gt.f32.partialorder %v132, 0.0
    %vm164 = vcmp.gt.f32.partialorder %v135, 0.0
    %vm165 = vcmp.gt.f32.partialorder %v138, 0.0
    %vm166 = vcmp.gt.f32.partialorder %v141, 0.0
    %vm167 = vcmp.gt.f32.partialorder %v144, 0.0
    %vm168 = vcmp.gt.f32.partialorder %v147, 0.0
    %vm169 = vcmp.gt.f32.partialorder %v150, 0.0
    %vm170 = vcmp.gt.f32.partialorder %v153, 0.0
    %v171 = vmul.f32 %v108, 0.1
    %v172 = vmul.f32 %v111, 0.1
    %v173 = vmul.f32 %v114, 0.1
    %v174 = vmul.f32 %v117, 0.1
    %v175 = vmul.f32 %v120, 0.1
    %v176 = vmul.f32 %v123, 0.1
    %v177 = vmul.f32 %v126, 0.1
    %v178 = vmul.f32 %v129, 0.1
    %v179 = vmul.f32 %v132, 0.1
    %v180 = vmul.f32 %v135, 0.1
    %v181 = vmul.f32 %v138, 0.1
    %v182 = vmul.f32 %v141, 0.1
    %v183 = vmul.f32 %v144, 0.1
    %v184 = vmul.f32 %v147, 0.1
    %v185 = vmul.f32 %v150, 0.1
    %v186 = vmul.f32 %v153, 0.1
    %v187 = vsel %vm155, %v108, %v171
    %v188 = vsel %vm156, %v111, %v172
    %v189 = vsel %vm157, %v114, %v173
    %v190 = vsel %vm158, %v117, %v174
    %v191 = vsel %vm159, %v120, %v175
    %v192 = vsel %vm160, %v123, %v176
    %v193 = vsel %vm161, %v126, %v177
    %v194 = vsel %vm162, %v129, %v178
    %v195 = vsel %vm163, %v132, %v179
    %v196 = vsel %vm164, %v135, %v180
    %v197 = vsel %vm165, %v138, %v181
    %v198 = vsel %vm166, %v141, %v182
    %v199 = vsel %vm167, %v144, %v183
    %v200 = vsel %vm168, %v147, %v184
    %v201 = vsel %vm169, %v150, %v185
    %v202 = vsel %vm170, %v153, %v186
    %v203 = vld [vmem:[%s2] sm:$0xf]
    %v204 = vld [vmem:[%s2 + $0x4] sm:$0xf]
    %v205 = vld [vmem:[%s2 + $0x8] sm:$0xf]
    %v206 = vld [vmem:[%s2 + $0xc] sm:$0xf]
    %v207 = vld [vmem:[%s2 + $0x10] sm:$0xf]
    %v208 = vld [vmem:[%s2 + $0x14] sm:$0xf]
    %v209 = vld [vmem:[%s2 + $0x18] sm:$0xf]
    %v210 = vld [vmem:[%s2 + $0x1c] sm:$0xf]
    %v211 = vld [vmem:[%s2 + $0x20] sm:$0xf]
    %v212 = vld [vmem:[%s2 + $0x24] sm:$0xf]
    %v213 = vld [vmem:[%s2 + $0x28] sm:$0xf]
    %v214 = vld [vmem:[%s2 + $0x2c] sm:$0xf]
    %v215 = vld [vmem:[%s2 + $0x30] sm:$0xf]
    %v216 = vld [vmem:[%s2 + $0x34] sm:$0xf]
    %v217 = vld [vmem:[%s2 + $0x38] sm:$0xf]
    %v218 = vld [vmem:[%s2 + $0x3c] sm:$0xf]
    %v219 = vpack.c.bf16 %v188, %v187
    %v220 = vpack.c.bf16 %v190, %v189
    %v221 = vpack.c.bf16 %v192, %v191
    %v222 = vpack.c.bf16 %v194, %v193
    %v223 = vpack.c.bf16 %v196, %v195
    %v224 = vpack.c.bf16 %v198, %v197
    %v225 = vpack.c.bf16 %v200, %v199
    %v226 = vpack.c.bf16 %v202, %v201
    %v227 = vld [vmem:[%s3] sm:$0xff]
    %v228 = vld [vmem:[%s3 + $0x8] sm:$0xff]
    %v229 = vld [vmem:[%s3 + $0x10] sm:$0xff]
    %v230 = vld [vmem:[%s3 + $0x18] sm:$0xff]
    %v231 = vld [vmem:[%s3 + $0x20] sm:$0xff]
    %v232 = vld [vmem:[%s3 + $0x28] sm:$0xff]
    %v233 = vld [vmem:[%s3 + $0x30] sm:$0xff]
    %v234 = vld [vmem:[%s3 + $0x38] sm:$0xff]
    %v235 = vld [vmem:[%s3 + $0x40] sm:$0xff]
    %v236 = vld [vmem:[%s3 + $0x48] sm:$0xff]
    %v237 = vld [vmem:[%s3 + $0x50] sm:$0xff]
    %v238 = vld [vmem:[%s3 + $0x58] sm:$0xff]
    %v239 = vld [vmem:[%s3 + $0x60] sm:$0xff]
    %v240 = vld [vmem:[%s3 + $0x68] sm:$0xff]
    %v241 = vld [vmem:[%s3 + $0x70] sm:$0xff]
    %v242 = vld [vmem:[%s3 + $0x78] sm:$0xff]
    %244 = vset.pattern.permute.xlu0 0
    %245 = vperm.xlu0 %244, %v227
    %v246 = vpop.permute.xlu0 %245
    %249 = vset.pattern.permute.xlu0 0
    %250 = vperm.xlu0 %249, %v228
    %v251 = vpop.permute.xlu0 %250
    %254 = vset.pattern.permute.xlu0 0
    %255 = vperm.xlu0 %254, %v229
    %v256 = vpop.permute.xlu0 %255
    %259 = vset.pattern.permute.xlu0 0
    %260 = vperm.xlu0 %259, %v230
    %v261 = vpop.permute.xlu0 %260
    %264 = vset.pattern.permute.xlu0 0
    %265 = vperm.xlu0 %264, %v231
    %v266 = vpop.permute.xlu0 %265
    %269 = vset.pattern.permute.xlu0 0
    %270 = vperm.xlu0 %269, %v232
    %v271 = vpop.permute.xlu0 %270
    %274 = vset.pattern.permute.xlu0 0
    %275 = vperm.xlu0 %274, %v233
    %v276 = vpop.permute.xlu0 %275
    %279 = vset.pattern.permute.xlu0 0
    %280 = vperm.xlu0 %279, %v234
    %v281 = vpop.permute.xlu0 %280
    %284 = vset.pattern.permute.xlu0 0
    %285 = vperm.xlu0 %284, %v235
    %v286 = vpop.permute.xlu0 %285
    %289 = vset.pattern.permute.xlu0 0
    %290 = vperm.xlu0 %289, %v236
    %v291 = vpop.permute.xlu0 %290
    %294 = vset.pattern.permute.xlu0 0
    %295 = vperm.xlu0 %294, %v237
    %v296 = vpop.permute.xlu0 %295
    %299 = vset.pattern.permute.xlu0 0
    %300 = vperm.xlu0 %299, %v238
    %v301 = vpop.permute.xlu0 %300
    %304 = vset.pattern.permute.xlu0 0
    %305 = vperm.xlu0 %304, %v239
    %v306 = vpop.permute.xlu0 %305
    %309 = vset.pattern.permute.xlu0 0
    %310 = vperm.xlu0 %309, %v240
    %v311 = vpop.permute.xlu0 %310
    %314 = vset.pattern.permute.xlu0 0
    %315 = vperm.xlu0 %314, %v241
    %v316 = vpop.permute.xlu0 %315
    %319 = vset.pattern.permute.xlu0 0
    %320 = vperm.xlu0 %319, %v242
    %v321 = vpop.permute.xlu0 %320
    %v339 = vunpack.c.l.b16 %v203
    %v340 = vunpack.c.l.b16 %v204
    %v341 = vunpack.c.l.b16 %v205
    %v342 = vunpack.c.l.b16 %v206
    %v343 = vunpack.c.l.b16 %v207
    %v344 = vunpack.c.l.b16 %v208
    %v345 = vunpack.c.l.b16 %v209
    %v346 = vunpack.c.l.b16 %v210
    %v347 = vunpack.c.l.b16 %v211
    %v348 = vunpack.c.l.b16 %v212
    %v349 = vunpack.c.l.b16 %v213
    %v350 = vunpack.c.l.b16 %v214
    %v351 = vunpack.c.l.b16 %v215
    %v352 = vunpack.c.l.b16 %v216
    %v353 = vunpack.c.l.b16 %v217
    %v354 = vunpack.c.l.b16 %v218
    %v355 = vpack.c.b16 %v340, %v339
    %v356 = vpack.c.b16 %v342, %v341
    %v357 = vpack.c.b16 %v344, %v343
    %v358 = vpack.c.b16 %v346, %v345
    %v359 = vpack.c.b16 %v348, %v347
    %v360 = vpack.c.b16 %v350, %v349
    %v361 = vpack.c.b16 %v352, %v351
    %v362 = vpack.c.b16 %v354, %v353
    %371 = vmatpush.bf16.msra.mxu0 %v226
    %372 = vmatpush.bf16.msra.mxu0 %v225
    %373 = vmatpush.bf16.msra.mxu0 %v224
    %374 = vmatpush.bf16.msra.mxu0 %v223
    %375 = vmatpush.bf16.msra.mxu0 %v222
    %376 = vmatpush.bf16.msra.mxu0 %v221
    %377 = vmatpush.bf16.msra.mxu0 %v220
    %378 = vmatpush.bf16.msra.mxu0 %v219
    %379 = vmatmul.bf16.gmra.mxu0 %v355
    %v380 = vpop.f32.mrf.mxu0
    %v381 = vadd.f32 %v246, %v380
    %v382 = vpop.f32.mrf.mxu0
    %v383 = vadd.f32 %v251, %v382
    %384 = vmatmul.bf16.gmra.mxu0 %v356
    %v385 = vpop.f32.mrf.mxu0
    %v386 = vadd.f32 %v256, %v385
    %v387 = vpop.f32.mrf.mxu0
    %v388 = vadd.f32 %v261, %v387
    %389 = vmatmul.bf16.gmra.mxu0 %v357
    %v390 = vpop.f32.mrf.mxu0
    %v391 = vadd.f32 %v266, %v390
    %v392 = vpop.f32.mrf.mxu0
    %v393 = vadd.f32 %v271, %v392
    %394 = vmatmul.bf16.gmra.mxu0 %v358
    %v395 = vpop.f32.mrf.mxu0
    %v396 = vadd.f32 %v276, %v395
    %v397 = vpop.f32.mrf.mxu0
    %v398 = vadd.f32 %v281, %v397
    %399 = vmatmul.bf16.gmra.mxu0 %v359
    %v400 = vpop.f32.mrf.mxu0
    %v401 = vadd.f32 %v286, %v400
    %v402 = vpop.f32.mrf.mxu0
    %v403 = vadd.f32 %v291, %v402
    %404 = vmatmul.bf16.gmra.mxu0 %v360
    %v405 = vpop.f32.mrf.mxu0
    %v406 = vadd.f32 %v296, %v405
    %v407 = vpop.f32.mrf.mxu0
    %v408 = vadd.f32 %v301, %v407
    %409 = vmatmul.bf16.gmra.mxu0 %v361
    %v410 = vpop.f32.mrf.mxu0
    %v411 = vadd.f32 %v306, %v410
    %v412 = vpop.f32.mrf.mxu0
    %v413 = vadd.f32 %v311, %v412
    %414 = vmatmul.bf16.gmra.mxu0 %v362
    %v415 = vpop.f32.mrf.mxu0
    %v416 = vadd.f32 %v316, %v415
    %v417 = vpop.f32.mrf.mxu0
    %v418 = vadd.f32 %v321, %v417
    %419 = vdwg.mxu0
    %vm420 = vcmp.gt.f32.partialorder %v381, 0.0
    %vm421 = vcmp.gt.f32.partialorder %v383, 0.0
    %vm422 = vcmp.gt.f32.partialorder %v386, 0.0
    %vm423 = vcmp.gt.f32.partialorder %v388, 0.0
    %vm424 = vcmp.gt.f32.partialorder %v391, 0.0
    %vm425 = vcmp.gt.f32.partialorder %v393, 0.0
    %vm426 = vcmp.gt.f32.partialorder %v396, 0.0
    %vm427 = vcmp.gt.f32.partialorder %v398, 0.0
    %vm428 = vcmp.gt.f32.partialorder %v401, 0.0
    %vm429 = vcmp.gt.f32.partialorder %v403, 0.0
    %vm430 = vcmp.gt.f32.partialorder %v406, 0.0
    %vm431 = vcmp.gt.f32.partialorder %v408, 0.0
    %vm432 = vcmp.gt.f32.partialorder %v411, 0.0
    %vm433 = vcmp.gt.f32.partialorder %v413, 0.0
    %vm434 = vcmp.gt.f32.partialorder %v416, 0.0
    %vm435 = vcmp.gt.f32.partialorder %v418, 0.0
    %v436 = vmul.f32 %v381, 0.1
    %v437 = vmul.f32 %v383, 0.1
    %v438 = vmul.f32 %v386, 0.1
    %v439 = vmul.f32 %v388, 0.1
    %v440 = vmul.f32 %v391, 0.1
    %v441 = vmul.f32 %v393, 0.1
    %v442 = vmul.f32 %v396, 0.1
    %v443 = vmul.f32 %v398, 0.1
    %v444 = vmul.f32 %v401, 0.1
    %v445 = vmul.f32 %v403, 0.1
    %v446 = vmul.f32 %v406, 0.1
    %v447 = vmul.f32 %v408, 0.1
    %v448 = vmul.f32 %v411, 0.1
    %v449 = vmul.f32 %v413, 0.1
    %v450 = vmul.f32 %v416, 0.1
    %v451 = vmul.f32 %v418, 0.1
    %v452 = vsel %vm420, %v381, %v436
    %v453 = vsel %vm421, %v383, %v437
    %v454 = vsel %vm422, %v386, %v438
    %v455 = vsel %vm423, %v388, %v439
    %v456 = vsel %vm424, %v391, %v440
    %v457 = vsel %vm425, %v393, %v441
    %v458 = vsel %vm426, %v396, %v442
    %v459 = vsel %vm427, %v398, %v443
    %v460 = vsel %vm428, %v401, %v444
    %v461 = vsel %vm429, %v403, %v445
    %v462 = vsel %vm430, %v406, %v446
    %v463 = vsel %vm431, %v408, %v447
    %v464 = vsel %vm432, %v411, %v448
    %v465 = vsel %vm433, %v413, %v449
    %v466 = vsel %vm434, %v416, %v450
    %v467 = vsel %vm435, %v418, %v451
    %v468 = vld [vmem:[%s4] sm:$0xf]
    %v469 = vpack.c.bf16 %v453, %v452
    %v470 = vpack.c.bf16 %v455, %v454
    %v471 = vpack.c.bf16 %v457, %v456
    %v472 = vpack.c.bf16 %v459, %v458
    %v473 = vpack.c.bf16 %v461, %v460
    %v474 = vpack.c.bf16 %v463, %v462
    %v475 = vpack.c.bf16 %v465, %v464
    %v476 = vpack.c.bf16 %v467, %v466
    %v477 = vld [vmem:[%s5] sm:$0xff]
    %479 = vset.pattern.permute.xlu0 0
    %480 = vperm.xlu0 %479, %v477
    %v481 = vpop.permute.xlu0 %480
    %483 = vmatpush.bf16.msra.mxu0 %v476
    %484 = vmatpush.bf16.msra.mxu0 %v475
    %485 = vmatpush.bf16.msra.mxu0 %v474
    %486 = vmatpush.bf16.msra.mxu0 %v473
    %487 = vmatpush.bf16.msra.mxu0 %v472
    %488 = vmatpush.bf16.msra.mxu0 %v471
    %489 = vmatpush.bf16.msra.mxu0 %v470
    %490 = vmatpush.bf16.msra.mxu0 %v469
    %491 = vmatmul.bf16.gmra.mxu0 %v468
    %v492 = vpop.f32.mrf.mxu0
    %v493 = vadd.f32 %v481, %v492
    %v494 = vpop.f32.mrf.mxu0
    %495 = vdwg.mxu0
    %496 = vst [vmem:[#allocation2] sm:$0xff] %v493
    // Predicated region
    $region26: #{tpu_custom_call.1} parent=1 // pred_check
      _
    $region27: #{tpu_custom_call.1} parent=1 // pred_check_branch
      %498 = sbr.rel (0) target = $region29
    $region28: #{tpu_custom_call.1} parent=1 // pred_region
      %500 = vsyncadd [#allocation3], 0
      %s502 = sshll.u32 [#allocation2], 4
      %s503 = int_to_ptr.vmem [resolvable:$true] %s502
      %s504 = sshll.u32 %s6, 4
      %s505 = int_to_ptr.hbm [resolvable:$true] %s504
      %507 = dma.vmem_to_hbm [thread:$0]  %s503, 128, %s505, [#allocation3]
    $region29: #{tpu_custom_call.1} parent=1 // pred_fallthru
      _
    // Predicated region
    $region30: #{tpu_custom_call.1} parent=1 // pred_check
      _
    $region31: #{tpu_custom_call.1} parent=1 // pred_check_branch
      %509 = sbr.rel (0) target = $region33
    $region32: #{tpu_custom_call.1} parent=1 // pred_region
      %511 = dma.done [#allocation3], 128
    $region33: #{tpu_custom_call.1} parent=1 // pred_fallthru
      _
    %512 = vsyncpa [#allocation3], 1

</llo_original>
